<compile_context>
chip_gen: v7x
topology: tpu7x:2x2x1
jax: 0.10.0
libtpu: 0.0.40
codegen_flags: <defaults>
</compile_context>

<pallas_src>
import functools
import math

import jax
import jax.numpy as jnp
from jax.experimental import pallas as pl
from jax.experimental.pallas import tpu as pltpu


def build_pe_table(d_model: int, max_len: int = 5000,
                   dtype=jnp.float32) -> jnp.ndarray:
    """Sinusoidal table, identical math to the PyTorch __init__.

    Stored as (max_len, d_model); the PyTorch buffer's singleton batch axis is
    handled by the broadcast inside the kernel.
    """
    position = jnp.arange(0, max_len, dtype=jnp.float32)[:, None]          # (max_len, 1)
    div_term = jnp.exp(
        jnp.arange(0, d_model, 2, dtype=jnp.float32) * (-math.log(10000.0) / d_model)
    )                                                                       # (d_model/2,)
    angles = position * div_term                                            # (max_len, d_model/2)
    pe = jnp.zeros((max_len, d_model), dtype=jnp.float32)
    pe = pe.at[:, 0::2].set(jnp.sin(angles))
    pe = pe.at[:, 1::2].set(jnp.cos(angles))
    return pe.astype(dtype)


def _pe_add_kernel(x_ref, pe_ref, o_ref, *, batch: int):
    # x_ref: (TS, B*D)   pe_ref: (TS, D)   o_ref: (TS, B*D)
    x = x_ref[...]
    pe = pe_ref[...].astype(x.dtype)
    if batch > 1:
        # Lane-tile pe B times so it lines up with the flattened (B, D) -> B*D layout.
        pe = jnp.concatenate([pe] * batch, axis=-1)
    o_ref[...] = (x + pe).astype(o_ref.dtype)


def _choose_tile_s(seq_len: int, row_bytes: int,
                   target_bytes: int = 2 * 1024 * 1024) -> int:
    """~2 MiB x-tiles: big enough to approach HBM roofline, small enough that the
    double-buffered x/out/pe tiles fit the default scoped VMEM on v5e/v6e/v7x."""
    ts = max(1, target_bytes // max(row_bytes, 1))
    ts = min(ts, seq_len)
    ts = ((ts + 7) // 8) * 8          # sublane-align (second-minor dim multiple of 8)
    return int(ts)


def _positional_encoding_forward(x: jnp.ndarray, pe: jnp.ndarray) -> jnp.ndarray:
    """y = x + pe[:x.shape[0]] broadcast over the batch axis. x: (S, B, D), pe: (max_len, D)."""
    S, B, D = x.shape
    assert pe.shape[-1] == D and pe.shape[0] >= S

    x2 = x.reshape(S, B * D)               # free contiguous collapse -> lane-dense layout
    pe2 = pe.astype(x.dtype)               # no-op when pe already matches x.dtype

    ts = _choose_tile_s(S, B * D * x.dtype.itemsize)
    grid = (pl.cdiv(S, ts),)

    out2 = pl.pallas_call(
        functools.partial(_pe_add_kernel, batch=B),
        out_shape=jax.ShapeDtypeStruct((S, B * D), x.dtype),
        grid_spec=pltpu.PrefetchScalarGridSpec(
            num_scalar_prefetch=0,
            grid=grid,
            in_specs=[
                # Last dims equal the full array extents -> exempt from (8,128) rule;
                # the tiled S dim is a multiple of 8.
                pl.BlockSpec((ts, B * D), lambda i: (i, 0)),
                # Full pe table; index_map selects the [:S] rows block by block.
                pl.BlockSpec((ts, D), lambda i: (i, 0)),
            ],
            out_specs=pl.BlockSpec((ts, B * D), lambda i: (i, 0)),
        ),
        compiler_params=pltpu.CompilerParams(
            dimension_semantics=("parallel",),   # shards S-tiles across TCs on v7x
        ),
        # Reuse x's HBM buffer for the output (x is donated by the jitted wrapper).
        input_output_aliases={0: 0},
    )(x2, pe2)

    return out2.reshape(S, B, D)


# Donate x so the input/output aliasing actually reuses its HBM buffer (pe, a
# persistent parameter, is NOT donated).
positional_encoding_forward = jax.jit(_positional_encoding_forward, donate_argnums=(0,))


if __name__ == "__main__":
    d_model = 32
    max_len = 64          # same formula as max_len=5000, just a smaller demo table
    seq = 8
    batch = 2

    key = jax.random.PRNGKey(0)
    x = jax.random.normal(key, (seq, batch, d_model), dtype=jnp.float32)
    pe = build_pe_table(d_model, max_len, dtype=x.dtype)      # (max_len, d_model)

    # Reference computed BEFORE the kernel call (x is donated into the jitted forward).
    ref = x + pe[:seq][:, None, :]

    y = positional_encoding_forward(x, pe)
    y = jax.block_until_ready(y)

    assert y.shape == (seq, batch, d_model)
    assert jnp.allclose(y, ref, atol=1e-6, rtol=1e-6), "mismatch vs reference"

    print("KERNEL_OK")
</pallas_src>

<mosaic_0001>
module attributes {stable_mosaic.version = 11 : i64} {
  func.func @_pe_add_kernel(%arg0: i32, %arg1: memref<8x64xf32, #tpu.memory_space<vmem>>, %arg2: memref<8x32xf32, #tpu.memory_space<vmem>>, %arg3: memref<8x64xf32, #tpu.memory_space<vmem>>) attributes {dimension_semantics = [#tpu.dimension_semantics<parallel>], iteration_bounds = array<i64: 1>, scalar_prefetch = 0 : i64, scratch_operands = 0 : i64, tpu.core_type = #tpu.core_type<tc>, window_params = [{transform_indices = @transform_0, window_bounds = array<i64: 8, 64>}, {transform_indices = @transform_1, window_bounds = array<i64: 8, 32>}, {transform_indices = @transform_2, window_bounds = array<i64: 8, 64>}]} {
    %c0 = arith.constant 0 : index
    %c0_0 = arith.constant 0 : index
    %0 = vector.load %arg1[%c0, %c0_0] : memref<8x64xf32, #tpu.memory_space<vmem>>, vector<8x64xf32>
    %c0_1 = arith.constant 0 : index
    %c0_2 = arith.constant 0 : index
    %1 = vector.load %arg2[%c0_1, %c0_2] : memref<8x32xf32, #tpu.memory_space<vmem>>, vector<8x32xf32>
    %2 = tpu.concatenate %1, %1 in 1 : vector<8x32xf32>, vector<8x32xf32> -> vector<8x64xf32>
    %3 = arith.addf %0, %2 : vector<8x64xf32>
    %c0_3 = arith.constant 0 : index
    %c0_4 = arith.constant 0 : index
    %4 = vector.load %arg3[%c0_3, %c0_4] : memref<8x64xf32, #tpu.memory_space<vmem>>, vector<8x64xf32>
    tpu.vector_store %arg3[%c0_3, %c0_4], %3 {strides = array<i32>} : memref<8x64xf32, #tpu.memory_space<vmem>>, vector<8x64xf32>,
    return
  }
  func.func @transform_0(%arg0: i32) -> (i32, i32) {
    %c0_i32 = arith.constant 0 : i32
    %c0_i32_0 = arith.constant 0 : i32
    return %arg0, %c0_i32 : i32, i32
  }
  func.func @transform_1(%arg0: i32) -> (i32, i32) {
    %c0_i32 = arith.constant 0 : i32
    %c0_i32_0 = arith.constant 0 : i32
    return %arg0, %c0_i32 : i32, i32
  }
  func.func @transform_2(%arg0: i32) -> (i32, i32) {
    %c0_i32 = arith.constant 0 : i32
    %c0_i32_0 = arith.constant 0 : i32
    return %arg0, %c0_i32 : i32, i32
  }
}

</mosaic_0001>

<llo_original>
// kernel: _positional_encoding_forward.1
$region0: #{_positional_encoding_forward.1}
  #allocation0 [shape = 'u32[]', space=smem, size = 0x4, offset = 0x4, fixed_abs, tag = 'smem constant byte address 0x4 - core index']
  #allocation1 [shape = 'u32[144,128]{1,0:T(1,128)}', space=vmem, size = 0x12000, scoped, tag = 'internal scratch']
  %s0 = inlined_call_operand.vmem [shape: f32[8,64], index: 0, kind: input, shape index: {}, may-alias: {0,2}]
  %s1 = inlined_call_operand.vmem [shape: f32[64,32], index: 1, kind: input, shape index: {}]
  %s2 = inlined_call_operand.vmem [shape: f32[8,64], index: 2, kind: output, shape index: {}, may-alias: {0,2}]
  %s3 = sld [smem:[#allocation0]]
  $region18: #{_positional_encoding_forward.1} parent=0
    _
  %s5 = ssub.s32 1, %s3
  %s6 = scalar_select 0, %s5, %s3
  // Predicated region
  $region2: #{_positional_encoding_forward.1} parent=0 // pred_check
    _
  $region3: #{_positional_encoding_forward.1} parent=0 // pred_check_branch
    %8 = sbr.rel (0) target = $region5
  $region4: #{_positional_encoding_forward.1} parent=0 // pred_region
    _
  $region5: #{_positional_encoding_forward.1} parent=0 // pred_fallthru
    _
  // Predicated region
  $region6: #{_positional_encoding_forward.1} parent=0 // pred_check
    _
  $region7: #{_positional_encoding_forward.1} parent=0 // pred_check_branch
    %10 = sbr.rel (0) target = $region9
  $region8: #{_positional_encoding_forward.1} parent=0 // pred_region
    _
  $region9: #{_positional_encoding_forward.1} parent=0 // pred_fallthru
    _
  %v11 = vld [vmem:[%s0] sm:$0xff]
  %v12 = vld [vmem:[%s1] sm:$0xff]
  %14 = vrot.lane.b32.xlu0 %v12, 32
  %v15 = vpop.permute.xlu0 %14
  %vm17 = vcmask 261120
  %v18 = vsel %vm17, %v12, %v15
  %v19 = vadd.f32 %v11, %v18
  %vm20 = vcmask 523264
  %21 = vst.msk [vmem:[%s2] sm:$0xff] %vm20, %v19
  // Predicated region
  $region10: #{_positional_encoding_forward.1} parent=0 // pred_check
    _
  $region11: #{_positional_encoding_forward.1} parent=0 // pred_check_branch
    %23 = sbr.rel (0) target = $region13
  $region12: #{_positional_encoding_forward.1} parent=0 // pred_region
    _
  $region13: #{_positional_encoding_forward.1} parent=0 // pred_fallthru
    _
  // Predicated region
  $region14: #{_positional_encoding_forward.1} parent=0 // pred_check
    _
  $region15: #{_positional_encoding_forward.1} parent=0 // pred_check_branch
    %25 = sbr.rel (0) target = $region17
  $region16: #{_positional_encoding_forward.1} parent=0 // pred_region
    _
  $region17: #{_positional_encoding_forward.1} parent=0 // pred_fallthru
    _

</llo_original>
